<compile_context>
chip_gen: v5e
topology: v5e:2x2
jax: 0.10.0
libtpu: 0.0.40
codegen_flags: <defaults>
</compile_context>

<pallas_src>
import jax
import jax.numpy as jnp
from jax.experimental import pallas as pl
from jax.experimental.pallas import tpu as pltpu


# --------------------------------------------------------------------------- #
# Small helpers
# --------------------------------------------------------------------------- #

def _round_up(n, m):
    return ((n + m - 1) // m) * m


def _cdiv(a, b):
    return (a + b - 1) // b


def _vmem_capacity_bytes():
    """Physical per-TensorCore VMEM; conservative 64 MiB fallback (v7x)."""
    try:
        info = pltpu.get_tpu_info()
        cap = getattr(info, "vmem_capacity_bytes", None)
        if cap:
            return int(cap)
    except Exception:
        pass
    return 64 * 1024 * 1024


# --------------------------------------------------------------------------- #
# One-time probe: does this Pallas accept pipeline_mode=pl.Buffered(1)?
# --------------------------------------------------------------------------- #

_BUFFERED1_OK = None


def _probe_copy_kernel(x_ref, o_ref):
    o_ref[...] = x_ref[...]


def _buffered1_supported():
    global _BUFFERED1_OK
    if _BUFFERED1_OK is None:
        try:
            spec = pl.BlockSpec((8, 128), lambda i: (0, 0),
                                pipeline_mode=pl.Buffered(1))
            fn = pl.pallas_call(
                _probe_copy_kernel,
                out_shape=jax.ShapeDtypeStruct((8, 128), jnp.float32),
                grid=(1,),
                in_specs=[spec],
                out_specs=pl.BlockSpec((8, 128), lambda i: (0, 0)),
            )
            jax.block_until_ready(fn(jnp.zeros((8, 128), jnp.float32)))
            _BUFFERED1_OK = True
        except Exception:
            _BUFFERED1_OK = False
    return _BUFFERED1_OK


# --------------------------------------------------------------------------- #
# Tile selection (generation-aware VMEM budget)
# --------------------------------------------------------------------------- #

def _pick_tile_n(D, a_itemsize, a_buffers, budget):
    """Column tile for A/b.  Full D unless A would eat more than half the VMEM
    budget; then the largest lane-dense (multiple of 128) divisor of D that
    fits.  Divisor requirement keeps the in-kernel column slice in bounds."""
    def a_bytes(tn):
        return a_buffers * (D * tn * a_itemsize + tn * 4)

    if a_bytes(D) <= budget // 2 or D % 128 != 0 or D <= 128:
        # TODO(synk): if D is not a multiple of 128, pad the feature dim once
        # outside the ODE-solver loop (lane-dense stores); here we just run it.
        return D
    for cand in range(D - 128, 127, -128):
        if D % cand == 0 and a_bytes(cand) <= budget // 2:
            return cand
    return 128


def _pick_tile_b(B, D, tile_n, a_itemsize, a_buffers, budget, max_tile_b):
    a_bytes = a_buffers * (D * tile_n * a_itemsize + tile_n * 4)

    def footprint(tb):
        # x (full-K) + v/dx/dv (tile_n wide), all double-buffered f32, + A/b.
        return 2 * tb * (D + 3 * tile_n) * 4 + a_bytes

    tile_b = min(_round_up(max_tile_b, 8), max(8, (B // 8) * 8))
    while tile_b > 8 and footprint(tile_b) > budget:
        tile_b = _round_up(max(tile_b // 2, 8), 8)

    # Megacore: if everything fits in one grid step but B is big enough to
    # split, halve the batch tile so both v7x TensorCores get a block.
    if _cdiv(B, tile_b) == 1 and _cdiv(D, tile_n) == 1 and B >= 256:
        tile_b = _round_up(_cdiv(B, 2), 8)
    return tile_b


def _footprint_bytes(tile_b, tile_n, D, a_itemsize, a_buffers):
    return (2 * tile_b * (D + 3 * tile_n) * 4
            + a_buffers * (D * tile_n * a_itemsize + tile_n * 4))


# --------------------------------------------------------------------------- #
# Kernel
# --------------------------------------------------------------------------- #

def _make_din_kernel(n_col_tiles):
    def din_kernel(alpha_ref, beta_ref, x_ref, v_ref, a_ref, b_ref,
                   dx_ref, dv_ref):
        alpha = alpha_ref[0]
        beta = beta_ref[0]
        inv_beta = 1.0 / beta

        tile_n = dv_ref.shape[-1]
        x_full = x_ref[...]                               # (TB, D) f32
        if n_col_tiles == 1:
            x_cols = x_full                               # (TB, D)
        else:
            col0 = pl.multiple_of(pl.program_id(1) * tile_n, tile_n)
            x_cols = x_ref[:, pl.ds(col0, tile_n)]        # (TB, TN)
        v_cols = v_ref[...]                               # (TB, TN)

        # grad_func(x) = x @ A + b  (MXU; A may be bf16, f32 accumulation).
        grad = jnp.dot(x_full.astype(a_ref.dtype), a_ref[...],
                       preferred_element_type=jnp.float32)
        grad = grad + b_ref[...]                          # (1, TN) broadcasts

        dv = (inv_beta - alpha) * x_cols - v_cols * inv_beta
        dx = dv - beta * grad

        dv_ref[...] = dv.astype(dv_ref.dtype)
        dx_ref[...] = dx.astype(dx_ref.dtype)

    return din_kernel


def _build_din_call(B, D, tile_b, tile_n, *, single_buffer_constants,
                    vmem_limit_bytes, flops, bytes_accessed):
    nb = _cdiv(B, tile_b)
    nn = _cdiv(D, tile_n)
    const_kw = ({"pipeline_mode": pl.Buffered(1)}
                if single_buffer_constants else {})

    return pl.pallas_call(
        _make_din_kernel(nn),
        out_shape=(jax.ShapeDtypeStruct((B, D), jnp.float32),
                   jax.ShapeDtypeStruct((B, D), jnp.float32)),
        grid=(nb, nn),
        in_specs=[
            pl.BlockSpec(memory_space=pltpu.SMEM),                    # alpha
            pl.BlockSpec(memory_space=pltpu.SMEM),                    # beta
            pl.BlockSpec((tile_b, D), lambda i, j: (i, 0)),           # x (full K)
            pl.BlockSpec((tile_b, tile_n), lambda i, j: (i, j)),      # v
            pl.BlockSpec((D, tile_n), lambda i, j: (0, j), **const_kw),   # A
            pl.BlockSpec((1, tile_n), lambda i, j: (0, j), **const_kw),   # b
        ],
        out_specs=(
            pl.BlockSpec((tile_b, tile_n), lambda i, j: (i, j)),      # dxdt
            pl.BlockSpec((tile_b, tile_n), lambda i, j: (i, j)),      # dvdt
        ),
        compiler_params=pltpu.CompilerParams(
            dimension_semantics=("parallel", "parallel"),
            vmem_limit_bytes=vmem_limit_bytes),
        cost_estimate=pl.CostEstimate(flops=flops, transcendentals=0,
                                      bytes_accessed=bytes_accessed),
    )


# --------------------------------------------------------------------------- #
# Public wrapper
# --------------------------------------------------------------------------- #

def din_forward(alpha, beta, x, v, A, b, *, use_bf16_matmul=True,
                max_tile_b=2048, _force_tiles=None):
    """Returns (dxdt, dvdt), matching DIN.forward(t, (x, v)) with
    grad_func(x) = x @ A + b.  x, v: (B, D); A: (D, D); b: (D,) or (1, D)."""
    B, D = x.shape
    assert v.shape == (B, D) and A.shape == (D, D)

    alpha = jnp.asarray(alpha, jnp.float32).reshape((1,))
    beta = jnp.asarray(beta, jnp.float32).reshape((1,))
    b2 = jnp.asarray(b, jnp.float32).reshape((1, D))
    a_dtype = jnp.bfloat16 if use_bf16_matmul else jnp.float32
    A = jnp.asarray(A).astype(a_dtype)
    x = jnp.asarray(x).astype(jnp.float32)
    v = jnp.asarray(v).astype(jnp.float32)

    single_buffer = _buffered1_supported()
    a_buffers = 1 if single_buffer else 2
    a_itemsize = jnp.dtype(a_dtype).itemsize

    capacity = _vmem_capacity_bytes()
    budget = (3 * capacity) // 4            # headroom for the compiler

    if _force_tiles is not None:
        tile_b, tile_n = _force_tiles
    else:
        tile_n = _pick_tile_n(D, a_itemsize, a_buffers, budget)
        tile_b = _pick_tile_b(B, D, tile_n, a_itemsize, a_buffers, budget,
                              max_tile_b)

    nb = _cdiv(B, tile_b)
    nn = _cdiv(D, tile_n)

    a_total_bytes = D * D * a_itemsize
    flops = 2 * B * D * D + 6 * B * D
    bytes_accessed = (4 * B * D * 4
                      + (a_total_bytes if nn == 1 else nb * a_total_bytes)
                      + D * 4 + 8)

    footprint = _footprint_bytes(tile_b, tile_n, D, a_itemsize, a_buffers)
    vmem_limit = int(min(max(footprint + 4 * 1024 * 1024, 32 * 1024 * 1024),
                         (9 * capacity) // 10))

    call = _build_din_call(
        B, D, tile_b, tile_n,
        single_buffer_constants=single_buffer,
        vmem_limit_bytes=vmem_limit,
        flops=flops, bytes_accessed=bytes_accessed)
    dx, dv = call(alpha, beta, x, v, A, b2)
    return dx, dv


def din_forward_ref(alpha, beta, x, v, A, b):
    grad = x @ A + jnp.reshape(b, (1, -1))
    dv = (1.0 / beta - alpha) * x - v / beta
    dx = dv - beta * grad
    return dx, dv


# --------------------------------------------------------------------------- #
# Demo / correctness checks
# --------------------------------------------------------------------------- #

if __name__ == "__main__":
    key = jax.random.PRNGKey(0)
    k_x, k_v, k_a, k_b = jax.random.split(key, 4)

    # DIN parameters (nn.Parameter init values from __init__).
    alpha = jnp.float32(1.0)
    beta = jnp.float32(0.5)

    # ---- small lane-aligned case (B=16, D=128) -----------------------------
    B, D = 16, 128
    x = jax.random.normal(k_x, (B, D), dtype=jnp.float32)
    v = jax.random.normal(k_v, (B, D), dtype=jnp.float32)
    A0 = jax.random.normal(k_a, (D, D), dtype=jnp.float32) / jnp.sqrt(D)
    A = 0.5 * (A0 + A0.T) + jnp.eye(D, dtype=jnp.float32)
    b = jax.random.normal(k_b, (1, D), dtype=jnp.float32)

    dx_ref, dv_ref = din_forward_ref(1.0, 0.5, x, v, A, b)

    # Full-precision matmul path (exact check).
    dx, dv = din_forward(alpha, beta, x, v, A, b, use_bf16_matmul=False)
    jax.block_until_ready((dx, dv))
    assert jnp.allclose(dx, dx_ref, atol=1e-4, rtol=1e-4)
    assert jnp.allclose(dv, dv_ref, atol=1e-4, rtol=1e-4)

    # Default path: bf16 A on the MXU (elementwise stays f32).
    dx16, dv16 = din_forward(alpha, beta, x, v, A, b)
    jax.block_until_ready((dx16, dv16))
    assert jnp.allclose(dx16, dx_ref, atol=5e-2, rtol=5e-2)
    assert jnp.allclose(dv16, dv_ref, atol=1e-4, rtol=1e-4)

    # ---- ragged batch (partial last row block, no pad / no output slice) ---
    B2 = 20
    x2 = jax.random.normal(k_x, (B2, D), dtype=jnp.float32)
    v2 = jax.random.normal(k_v, (B2, D), dtype=jnp.float32)
    dx2, dv2 = din_forward(alpha, beta, x2, v2, A, b, use_bf16_matmul=False)
    jax.block_until_ready((dx2, dv2))
    dx2_ref, dv2_ref = din_forward_ref(1.0, 0.5, x2, v2, A, b)
    assert jnp.allclose(dx2, dx2_ref, atol=1e-4, rtol=1e-4)
    assert jnp.allclose(dv2, dv2_ref, atol=1e-4, rtol=1e-4)

    # ---- column-tiled (large-D escape hatch) path, forced at small D -------
    B3, D3 = 16, 256
    x3 = jax.random.normal(k_x, (B3, D3), dtype=jnp.float32)
    v3 = jax.random.normal(k_v, (B3, D3), dtype=jnp.float32)
    A30 = jax.random.normal(k_a, (D3, D3), dtype=jnp.float32) / jnp.sqrt(D3)
    A3 = 0.5 * (A30 + A30.T) + jnp.eye(D3, dtype=jnp.float32)
    b3 = jax.random.normal(k_b, (1, D3), dtype=jnp.float32)
    dx3, dv3 = din_forward(alpha, beta, x3, v3, A3, b3,
                           use_bf16_matmul=False, _force_tiles=(8, 128))
    jax.block_until_ready((dx3, dv3))
    dx3_ref, dv3_ref = din_forward_ref(1.0, 0.5, x3, v3, A3, b3)
    assert jnp.allclose(dx3, dx3_ref, atol=1e-4, rtol=1e-4)
    assert jnp.allclose(dv3, dv3_ref, atol=1e-4, rtol=1e-4)

    print("KERNEL_OK")
</pallas_src>

<mosaic_0001>
module attributes {stable_mosaic.version = 11 : i64} {
  func.func @_probe_copy_kernel(%arg0: i32, %arg1: memref<8x128xf32, #tpu.memory_space<vmem>>, %arg2: memref<8x128xf32, #tpu.memory_space<vmem>>) attributes {dimension_semantics = [#tpu.dimension_semantics<arbitrary>], iteration_bounds = array<i64: 1>, scalar_prefetch = 0 : i64, scratch_operands = 0 : i64, tpu.core_type = #tpu.core_type<tc>, window_params = [{pipeline_mode = #tpu.pipeline_mode<synchronous>, transform_indices = @transform_0, window_bounds = array<i64: 8, 128>}, {pipeline_mode = #tpu.pipeline_mode<synchronous>, transform_indices = @transform_1, window_bounds = array<i64: 8, 128>}]} {
    %c0 = arith.constant 0 : index
    %c0_0 = arith.constant 0 : index
    %0 = vector.load %arg1[%c0, %c0_0] : memref<8x128xf32, #tpu.memory_space<vmem>>, vector<8x128xf32>
    %c0_1 = arith.constant 0 : index
    %c0_2 = arith.constant 0 : index
    %1 = vector.load %arg2[%c0_1, %c0_2] : memref<8x128xf32, #tpu.memory_space<vmem>>, vector<8x128xf32>
    tpu.vector_store %arg2[%c0_1, %c0_2], %0 {strides = array<i32>} : memref<8x128xf32, #tpu.memory_space<vmem>>, vector<8x128xf32>,
    return
  }
  func.func @transform_0(%arg0: i32) -> (i32, i32) {
    %c0_i32 = arith.constant 0 : i32
    %c0_i32_0 = arith.constant 0 : i32
    %c0_i32_1 = arith.constant 0 : i32
    return %c0_i32, %c0_i32_0 : i32, i32
  }
  func.func @transform_1(%arg0: i32) -> (i32, i32) {
    %c0_i32 = arith.constant 0 : i32
    %c0_i32_0 = arith.constant 0 : i32
    %c0_i32_1 = arith.constant 0 : i32
    return %c0_i32, %c0_i32_0 : i32, i32
  }
}

module attributes {stable_mosaic.version = 11 : i64} {
  func.func @din_kernel(%arg0: i32, %arg1: i32, %arg2: memref<1xf32, #tpu.memory_space<smem>>, %arg3: memref<1xf32, #tpu.memory_space<smem>>, %arg4: memref<16x128xf32, #tpu.memory_space<vmem>>, %arg5: memref<16x128xf32, #tpu.memory_space<vmem>>, %arg6: memref<128x128xf32, #tpu.memory_space<vmem>>, %arg7: memref<1x128xf32, #tpu.memory_space<vmem>>, %arg8: memref<16x128xf32, #tpu.memory_space<vmem>>, %arg9: memref<16x128xf32, #tpu.memory_space<vmem>>) attributes {dimension_semantics = [#tpu.dimension_semantics<parallel>, #tpu.dimension_semantics<parallel>], iteration_bounds = array<i64: 1, 1>, scalar_prefetch = 0 : i64, scratch_operands = 0 : i64, tpu.core_type = #tpu.core_type<tc>, window_params = [{transform_indices = @transform_0, window_bounds = array<i64: 1>}, {transform_indices = @transform_1, window_bounds = array<i64: 1>}, {transform_indices = @transform_2, window_bounds = array<i64: 16, 128>}, {transform_indices = @transform_3, window_bounds = array<i64: 16, 128>}, {transform_indices = @transform_4, window_bounds = array<i64: 128, 128>}, {transform_indices = @transform_5, window_bounds = array<i64: 1, 128>}, {transform_indices = @transform_6, window_bounds = array<i64: 16, 128>}, {transform_indices = @transform_7, window_bounds = array<i64: 16, 128>}]} {
    %c0 = arith.constant 0 : index
    %0 = memref.load %arg2[%c0] : memref<1xf32, #tpu.memory_space<smem>>
    %c0_0 = arith.constant 0 : index
    %1 = memref.load %arg3[%c0_0] : memref<1xf32, #tpu.memory_space<smem>>
    %cst = arith.constant 1.000000e+00 : f32
    %2 = arith.divf %cst, %1 : f32
    %c0_1 = arith.constant 0 : index
    %c0_2 = arith.constant 0 : index
    %3 = vector.load %arg4[%c0_1, %c0_2] : memref<16x128xf32, #tpu.memory_space<vmem>>, vector<16x128xf32>
    %c0_3 = arith.constant 0 : index
    %c0_4 = arith.constant 0 : index
    %4 = vector.load %arg5[%c0_3, %c0_4] : memref<16x128xf32, #tpu.memory_space<vmem>>, vector<16x128xf32>
    %c0_5 = arith.constant 0 : index
    %c0_6 = arith.constant 0 : index
    %5 = vector.load %arg6[%c0_5, %c0_6] : memref<128x128xf32, #tpu.memory_space<vmem>>, vector<128x128xf32>
    %cst_7 = arith.constant dense<0.000000e+00> : vector<16x128xf32>
    %6 = tpu.matmul %3, %5, %cst_7 {dimension_numbers = #tpu.dot_dimension_numbers<[1], [0], [0], [1], [0, 0, 1, 1], [], []>} : vector<16x128xf32>, vector<128x128xf32>, vector<16x128xf32> -> vector<16x128xf32>
    %c0_8 = arith.constant 0 : index
    %c0_9 = arith.constant 0 : index
    %7 = vector.load %arg7[%c0_8, %c0_9] : memref<1x128xf32, #tpu.memory_space<vmem>>, vector<1x128xf32>
    %8 = vector.broadcast %7 : vector<1x128xf32> to vector<16x128xf32>
    %9 = arith.addf %6, %8 : vector<16x128xf32>
    %10 = arith.subf %2, %0 : f32
    %11 = vector.broadcast %10 : f32 to vector<16x128xf32>
    %12 = arith.mulf %11, %3 : vector<16x128xf32>
    %13 = vector.broadcast %2 : f32 to vector<16x128xf32>
    %14 = arith.mulf %4, %13 : vector<16x128xf32>
    %15 = arith.subf %12, %14 : vector<16x128xf32>
    %16 = vector.broadcast %1 : f32 to vector<16x128xf32>
    %17 = arith.mulf %16, %9 : vector<16x128xf32>
    %18 = arith.subf %15, %17 : vector<16x128xf32>
    %c0_10 = arith.constant 0 : index
    %c0_11 = arith.constant 0 : index
    %19 = vector.load %arg9[%c0_10, %c0_11] : memref<16x128xf32, #tpu.memory_space<vmem>>, vector<16x128xf32>
    tpu.vector_store %arg9[%c0_10, %c0_11], %15 {strides = array<i32>} : memref<16x128xf32, #tpu.memory_space<vmem>>, vector<16x128xf32>,
    %c0_12 = arith.constant 0 : index
    %c0_13 = arith.constant 0 : index
    %20 = vector.load %arg8[%c0_12, %c0_13] : memref<16x128xf32, #tpu.memory_space<vmem>>, vector<16x128xf32>
    tpu.vector_store %arg8[%c0_12, %c0_13], %18 {strides = array<i32>} : memref<16x128xf32, #tpu.memory_space<vmem>>, vector<16x128xf32>,
    return
  }
  func.func @transform_0(%arg0: i32, %arg1: i32) -> i32 {
    %c0_i32 = arith.constant 0 : i32
    %c0_i32_0 = arith.constant 0 : i32
    return %c0_i32 : i32
  }
  func.func @transform_1(%arg0: i32, %arg1: i32) -> i32 {
    %c0_i32 = arith.constant 0 : i32
    %c0_i32_0 = arith.constant 0 : i32
    return %c0_i32 : i32
  }
  func.func @transform_2(%arg0: i32, %arg1: i32) -> (i32, i32) {
    %c0_i32 = arith.constant 0 : i32
    %c0_i32_0 = arith.constant 0 : i32
    return %arg0, %c0_i32 : i32, i32
  }
  func.func @transform_3(%arg0: i32, %arg1: i32) -> (i32, i32) {
    %c0_i32 = arith.constant 0 : i32
    return %arg0, %arg1 : i32, i32
  }
  func.func @transform_4(%arg0: i32, %arg1: i32) -> (i32, i32) {
    %c0_i32 = arith.constant 0 : i32
    %c0_i32_0 = arith.constant 0 : i32
    return %c0_i32, %arg1 : i32, i32
  }
  func.func @transform_5(%arg0: i32, %arg1: i32) -> (i32, i32) {
    %c0_i32 = arith.constant 0 : i32
    %c0_i32_0 = arith.constant 0 : i32
    return %c0_i32, %arg1 : i32, i32
  }
  func.func @transform_6(%arg0: i32, %arg1: i32) -> (i32, i32) {
    %c0_i32 = arith.constant 0 : i32
    return %arg0, %arg1 : i32, i32
  }
  func.func @transform_7(%arg0: i32, %arg1: i32) -> (i32, i32) {
    %c0_i32 = arith.constant 0 : i32
    return %arg0, %arg1 : i32, i32
  }
}

</mosaic_0001>

<llo_original>
// kernel: tpu_custom_call.1
$region0: #{tpu_custom_call.1}
  #allocation0 [shape = 'u32[]', space=smem, size = 0x4, offset = 0x4, fixed_abs, tag = 'smem constant byte address 0x4 - core index']
  #allocation1 [shape = 'u32[72,128]{1,0:T(1,128)}', space=vmem, size = 0x9000, scoped, tag = 'internal scratch']
  %s0 = inlined_call_operand.hbm [shape: f32[8,128], index: 0, kind: input, shape index: {}]
  %s1 = inlined_call_operand.hbm [shape: f32[8,128], index: 1, kind: output, shape index: {}]
  %s2 = sld [smem:[#allocation0]]
  $region18: #{tpu_custom_call.1} parent=0
    _
  %s4 = ssub.s32 1, %s2
  %s5 = scalar_select 0, %s4, %s2
  $region1: #{tpu_custom_call.1} parent=0
    #allocation2 [shape = 'u8[4096]{0}', space=vmem, size = 0x1000, scoped, tag = 'input window, operand 0, single buffered']
    #allocation3 [shape = 's32[1]{0}', space=sflag, size = 0x4, scoped, tag = 'scoped memory for tpu_custom_call.1']
    #allocation4 [shape = 's32[1]{0}', space=sflag, size = 0x4, scoped, tag = 'scoped memory for tpu_custom_call.1']
    #allocation5 [shape = 'u8[4096]{0}', space=vmem, size = 0x1000, scoped, tag = 'output window, operand 0, single buffered']
    %6 = vsyncpa [#allocation3], 0
    %7 = vsyncpa [#allocation4], 0
    // Predicated region
    $region2: #{tpu_custom_call.1} parent=1 // pred_check
      _
    $region3: #{tpu_custom_call.1} parent=1 // pred_check_branch
      %9 = sbr.rel (0) target = $region5
    $region4: #{tpu_custom_call.1} parent=1 // pred_region
      %11 = vsyncadd [#allocation3], 0
      %s13 = sshll.u32 %s0, 4
      %s14 = int_to_ptr.hbm [resolvable:$true] %s13
      %s15 = sshll.u32 [#allocation2], 4
      %s16 = int_to_ptr.vmem [resolvable:$true] %s15
      %18 = dma.hbm_to_vmem [thread:$0]  %s14, 128, %s16, [#allocation3]
    $region5: #{tpu_custom_call.1} parent=1 // pred_fallthru
      _
    // Predicated region
    $region6: #{tpu_custom_call.1} parent=1 // pred_check
      _
    $region7: #{tpu_custom_call.1} parent=1 // pred_check_branch
      %20 = sbr.rel (0) target = $region9
    $region8: #{tpu_custom_call.1} parent=1 // pred_region
      %22 = dma.done [#allocation3], 128
    $region9: #{tpu_custom_call.1} parent=1 // pred_fallthru
      _
    %v23 = vld [vmem:[#allocation2] sm:$0xff]
    %24 = vst [vmem:[#allocation5] sm:$0xff] %v23
    // Predicated region
    $region10: #{tpu_custom_call.1} parent=1 // pred_check
      _
    $region11: #{tpu_custom_call.1} parent=1 // pred_check_branch
      %26 = sbr.rel (0) target = $region13
    $region12: #{tpu_custom_call.1} parent=1 // pred_region
      %28 = vsyncadd [#allocation4], 0
      %s30 = sshll.u32 [#allocation5], 4
      %s31 = int_to_ptr.vmem [resolvable:$true] %s30
      %s32 = sshll.u32 %s1, 4
      %s33 = int_to_ptr.hbm [resolvable:$true] %s32
      %35 = dma.vmem_to_hbm [thread:$0]  %s31, 128, %s33, [#allocation4]
    $region13: #{tpu_custom_call.1} parent=1 // pred_fallthru
      _
    // Predicated region
    $region14: #{tpu_custom_call.1} parent=1 // pred_check
      _
    $region15: #{tpu_custom_call.1} parent=1 // pred_check_branch
      %37 = sbr.rel (0) target = $region17
    $region16: #{tpu_custom_call.1} parent=1 // pred_region
      %39 = dma.done [#allocation4], 128
    $region17: #{tpu_custom_call.1} parent=1 // pred_fallthru
      _
    %40 = vsyncpa [#allocation3], 1
    %41 = vsyncpa [#allocation4], 1

// kernel: tpu_custom_call.1
$region0: #{tpu_custom_call.1}
  #allocation0 [shape = 'u32[]', space=smem, size = 0x4, offset = 0x4, fixed_abs, tag = 'smem constant byte address 0x4 - core index']
  #allocation1 [shape = 'u32[72,128]{1,0:T(1,128)}', space=vmem, size = 0x9000, scoped, tag = 'internal scratch']
  #allocation2 [shape = 'f32[1]{0:T(128)S(6)}', space=smem, size = 0x200, scoped, tag = 'scoped memory for tpu_custom_call.1']
  #allocation3 [shape = 'f32[1]{0:T(128)S(6)}', space=smem, size = 0x200, scoped, tag = 'scoped memory for tpu_custom_call.1']
  %s0 = inlined_call_operand.<no memory space> [shape: f32[1], index: 0, kind: input, shape index: {}]
  %s1 = inlined_call_operand.<no memory space> [shape: f32[1], index: 1, kind: input, shape index: {}]
  %s2 = inlined_call_operand.hbm [shape: f32[16,128], index: 2, kind: input, shape index: {}]
  %s3 = inlined_call_operand.hbm [shape: f32[16,128], index: 3, kind: input, shape index: {}]
  %s4 = inlined_call_operand.hbm [shape: f32[128,128], index: 4, kind: input, shape index: {}]
  %s5 = inlined_call_operand.vmem [shape: f32[1,128], index: 5, kind: input, shape index: {}]
  %s6 = inlined_call_operand.hbm [shape: f32[16,128], index: 6, kind: output, shape index: {0}]
  %s7 = inlined_call_operand.hbm [shape: f32[16,128], index: 7, kind: output, shape index: {1}]
  %8 = xla_tuple %s6, %s7
  %s9 = sld [smem:[#allocation0]]
  $region54: #{tpu_custom_call.1} parent=0
    _
  %s11 = ssub.s32 1, %s9
  %s12 = scalar_select 0, %s11, %s9
  %13 = sst [smem:[#allocation2]] %s0
  %14 = sst [smem:[#allocation3]] %s1
  $region1: #{tpu_custom_call.1} parent=0
    #allocation4 [shape = 'u8[8192]{0}', space=vmem, size = 0x2000, scoped, tag = 'input window, operand 2, single buffered']
    #allocation5 [shape = 's32[1]{0}', space=sflag, size = 0x4, scoped, tag = 'scoped memory for tpu_custom_call.1']
    #allocation6 [shape = 's32[1]{0}', space=sflag, size = 0x4, scoped, tag = 'scoped memory for tpu_custom_call.1']
    #allocation7 [shape = 'u8[8192]{0}', space=vmem, size = 0x2000, scoped, tag = 'input window, operand 3, single buffered']
    #allocation8 [shape = 's32[1]{0}', space=sflag, size = 0x4, scoped, tag = 'scoped memory for tpu_custom_call.1']
    #allocation9 [shape = 'u8[65536]{0}', space=vmem, size = 0x10000, scoped, tag = 'input window, operand 4, single buffered']
    #allocation10 [shape = 'u8[8192]{0}', space=vmem, size = 0x2000, scoped, tag = 'output window, operand 0, single buffered']
    #allocation11 [shape = 'u8[8192]{0}', space=vmem, size = 0x2000, scoped, tag = 'output window, operand 1, single buffered']
    #allocation12 [shape = 's32[1]{0}', space=sflag, size = 0x4, scoped, tag = 'scoped memory for tpu_custom_call.1']
    %15 = vsyncpa [#allocation5], 0
    %16 = vsyncpa [#allocation8], 0
    %17 = vsyncpa [#allocation6], 0
    %18 = vsyncpa [#allocation12], 0
    // Predicated region
    $region2: #{tpu_custom_call.1} parent=1 // pred_check
      _
    $region3: #{tpu_custom_call.1} parent=1 // pred_check_branch
      %20 = sbr.rel (0) target = $region5
    $region4: #{tpu_custom_call.1} parent=1 // pred_region
      _
    $region5: #{tpu_custom_call.1} parent=1 // pred_fallthru
      _
    // Predicated region
    $region6: #{tpu_custom_call.1} parent=1 // pred_check
      _
    $region7: #{tpu_custom_call.1} parent=1 // pred_check_branch
      %22 = sbr.rel (0) target = $region9
    $region8: #{tpu_custom_call.1} parent=1 // pred_region
      _
    $region9: #{tpu_custom_call.1} parent=1 // pred_fallthru
      _
    // Predicated region
    $region10: #{tpu_custom_call.1} parent=1 // pred_check
      _
    $region11: #{tpu_custom_call.1} parent=1 // pred_check_branch
      %24 = sbr.rel (0) target = $region13
    $region12: #{tpu_custom_call.1} parent=1 // pred_region
      %26 = vsyncadd [#allocation5], 0
      %s27 = sshll.u32 %s2, 4
      %s28 = int_to_ptr.hbm [resolvable:$true] %s27
      %s29 = sshll.u32 [#allocation4], 4
      %s30 = int_to_ptr.vmem [resolvable:$true] %s29
      %35 = dma.hbm_to_vmem [thread:$0]  %s28, 256, %s30, [#allocation5], 128, 128, 8
    $region13: #{tpu_custom_call.1} parent=1 // pred_fallthru
      _
    // Predicated region
    $region14: #{tpu_custom_call.1} parent=1 // pred_check
      _
    $region15: #{tpu_custom_call.1} parent=1 // pred_check_branch
      %37 = sbr.rel (0) target = $region17
    $region16: #{tpu_custom_call.1} parent=1 // pred_region
      %39 = vsyncadd [#allocation8], 0
      %s40 = sshll.u32 %s3, 4
      %s41 = int_to_ptr.hbm [resolvable:$true] %s40
      %s42 = sshll.u32 [#allocation7], 4
      %s43 = int_to_ptr.vmem [resolvable:$true] %s42
      %48 = dma.hbm_to_vmem [thread:$0]  %s41, 256, %s43, [#allocation8], 128, 128, 8
    $region17: #{tpu_custom_call.1} parent=1 // pred_fallthru
      _
    // Predicated region
    $region18: #{tpu_custom_call.1} parent=1 // pred_check
      _
    $region19: #{tpu_custom_call.1} parent=1 // pred_check_branch
      %50 = sbr.rel (0) target = $region21
    $region20: #{tpu_custom_call.1} parent=1 // pred_region
      %52 = vsyncadd [#allocation8], 0
      %s53 = sshll.u32 %s4, 4
      %s54 = int_to_ptr.hbm [resolvable:$true] %s53
      %s55 = sshll.u32 [#allocation9], 4
      %s56 = int_to_ptr.vmem [resolvable:$true] %s55
      %61 = dma.hbm_to_vmem [thread:$0]  %s54, 2048, %s56, [#allocation8], 128, 128, 8
    $region21: #{tpu_custom_call.1} parent=1 // pred_fallthru
      _
    // Predicated region
    $region22: #{tpu_custom_call.1} parent=1 // pred_check
      _
    $region23: #{tpu_custom_call.1} parent=1 // pred_check_branch
      %63 = sbr.rel (0) target = $region25
    $region24: #{tpu_custom_call.1} parent=1 // pred_region
      _
    $region25: #{tpu_custom_call.1} parent=1 // pred_fallthru
      _
    // Predicated region
    $region26: #{tpu_custom_call.1} parent=1 // pred_check
      _
    $region27: #{tpu_custom_call.1} parent=1 // pred_check_branch
      %65 = sbr.rel (0) target = $region29
    $region28: #{tpu_custom_call.1} parent=1 // pred_region
      %67 = dma.done [#allocation5], 256
    $region29: #{tpu_custom_call.1} parent=1 // pred_fallthru
      _
    // Predicated region
    $region30: #{tpu_custom_call.1} parent=1 // pred_check
      _
    $region31: #{tpu_custom_call.1} parent=1 // pred_check_branch
      %69 = sbr.rel (0) target = $region33
    $region32: #{tpu_custom_call.1} parent=1 // pred_region
      %71 = dma.done [#allocation8], 256
    $region33: #{tpu_custom_call.1} parent=1 // pred_fallthru
      _
    // Predicated region
    $region34: #{tpu_custom_call.1} parent=1 // pred_check
      _
    $region35: #{tpu_custom_call.1} parent=1 // pred_check_branch
      %73 = sbr.rel (0) target = $region37
    $region36: #{tpu_custom_call.1} parent=1 // pred_region
      %75 = dma.done [#allocation8], 2048
    $region37: #{tpu_custom_call.1} parent=1 // pred_fallthru
      _
    %s76 = sld [smem:[#allocation2]]
    %s77 = sld [smem:[#allocation3]]
    %v78 = vstv %s77
    %v79 = vrcp.pop %v78
    %v80 = vmul.f32 %v78, %v79
    %v81 = vsub.f32 1.0, %v80
    %v82 = vmul.f32 %v79, %v81
    %v83 = vadd.f32 %v79, %v82
    %vm84 = vweird.f32 %v78
    %vm85 = vweird.f32 %v79
    %vm86 = vmor %vm84, %vm85
    %v87 = vsel %vm86, %v79, %v83
    %v88 = vand.u32 2147483647, %v78
    %vm89 = vcmp.eq.f32.partialorder %v88, 8.507059e+37
    %v90 = vand.u32 %v78, 2147483648
    %v91 = vor.u32 1.1754944e-38, %v90
    %v92 = vsel %vm89, %v91, %v87
    %s93 = vtos %v92
    %v94 = vld [vmem:[#allocation4] sm:$0xff]
    %v95 = vld [vmem:[#allocation4 + $0x8] sm:$0xff]
    %v96 = vld [vmem:[#allocation7] sm:$0xff]
    %v97 = vld [vmem:[#allocation7 + $0x8] sm:$0xff]
    %v98 = vld [vmem:[#allocation9] sm:$0xff]
    %v99 = vld [vmem:[#allocation9 + $0x8] sm:$0xff]
    %v100 = vld [vmem:[#allocation9 + $0x10] sm:$0xff]
    %v101 = vld [vmem:[#allocation9 + $0x18] sm:$0xff]
    %v102 = vld [vmem:[#allocation9 + $0x20] sm:$0xff]
    %v103 = vld [vmem:[#allocation9 + $0x28] sm:$0xff]
    %v104 = vld [vmem:[#allocation9 + $0x30] sm:$0xff]
    %v105 = vld [vmem:[#allocation9 + $0x38] sm:$0xff]
    %v106 = vld [vmem:[#allocation9 + $0x40] sm:$0xff]
    %v107 = vld [vmem:[#allocation9 + $0x48] sm:$0xff]
    %v108 = vld [vmem:[#allocation9 + $0x50] sm:$0xff]
    %v109 = vld [vmem:[#allocation9 + $0x58] sm:$0xff]
    %v110 = vld [vmem:[#allocation9 + $0x60] sm:$0xff]
    %v111 = vld [vmem:[#allocation9 + $0x68] sm:$0xff]
    %v112 = vld [vmem:[#allocation9 + $0x70] sm:$0xff]
    %v113 = vld [vmem:[#allocation9 + $0x78] sm:$0xff]
    %v114 = vld [vmem:[%s5] sm:$0x1]
    %v116 = vperm.slane %v114, 0
    %118 = vmatpush.msra.mxu0 %v113
    %119 = vmatpush.msra.mxu0 %v112
    %120 = vmatpush.msra.mxu0 %v111
    %121 = vmatpush.msra.mxu0 %v110
    %122 = vmatpush.msra.mxu0 %v109
    %123 = vmatpush.msra.mxu0 %v108
    %124 = vmatpush.msra.mxu0 %v107
    %125 = vmatpush.msra.mxu0 %v106
    %126 = vmatpush.msra.mxu0 %v105
    %127 = vmatpush.msra.mxu0 %v104
    %128 = vmatpush.msra.mxu0 %v103
    %129 = vmatpush.msra.mxu0 %v102
    %130 = vmatpush.msra.mxu0 %v101
    %131 = vmatpush.msra.mxu0 %v100
    %132 = vmatpush.msra.mxu0 %v99
    %133 = vmatpush.msra.mxu0 %v98
    %134 = vmatmul.f32.gmra.mxu0 %v94
    %v135 = vpop.f32.mrf.mxu0
    %v136 = vadd.f32 %v116, %v135
    %137 = vmatmul.f32.gmra.mxu0 %v95
    %v138 = vpop.f32.mrf.mxu0
    %v139 = vadd.f32 %v116, %v138
    %140 = vdwg.mxu0
    %s141 = ssub.f32 %s93, %s76
    %v142 = vstv %s141
    %v143 = vmul.f32 %v142, %v94
    %v144 = vmul.f32 %v142, %v95
    %v145 = vstv %s93
    %v146 = vmul.f32 %v96, %v145
    %v147 = vmul.f32 %v97, %v145
    %v148 = vsub.f32 %v143, %v146
    %v149 = vsub.f32 %v144, %v147
    %v150 = vstv %s77
    %v151 = vmul.f32 %v150, %v136
    %v152 = vmul.f32 %v150, %v139
    %v153 = vsub.f32 %v148, %v151
    %v154 = vsub.f32 %v149, %v152
    %155 = vst [vmem:[#allocation11] sm:$0xff] %v148
    %156 = vst [vmem:[#allocation11 + $0x8] sm:$0xff] %v149
    %157 = vst [vmem:[#allocation10] sm:$0xff] %v153
    %158 = vst [vmem:[#allocation10 + $0x8] sm:$0xff] %v154
    // Predicated region
    $region38: #{tpu_custom_call.1} parent=1 // pred_check
      _
    $region39: #{tpu_custom_call.1} parent=1 // pred_check_branch
      %160 = sbr.rel (0) target = $region41
    $region40: #{tpu_custom_call.1} parent=1 // pred_region
      %162 = vsyncadd [#allocation6], 0
      %s163 = sshll.u32 [#allocation10], 4
      %s164 = int_to_ptr.vmem [resolvable:$true] %s163
      %s165 = sshll.u32 %s6, 4
      %s166 = int_to_ptr.hbm [resolvable:$true] %s165
      %171 = dma.vmem_to_hbm [thread:$0]  %s164, 256, %s166, [#allocation6], 128, 128, 8
    $region41: #{tpu_custom_call.1} parent=1 // pred_fallthru
      _
    // Predicated region
    $region42: #{tpu_custom_call.1} parent=1 // pred_check
      _
    $region43: #{tpu_custom_call.1} parent=1 // pred_check_branch
      %173 = sbr.rel (0) target = $region45
    $region44: #{tpu_custom_call.1} parent=1 // pred_region
      %175 = vsyncadd [#allocation12], 0
      %s176 = sshll.u32 [#allocation11], 4
      %s177 = int_to_ptr.vmem [resolvable:$true] %s176
      %s178 = sshll.u32 %s7, 4
      %s179 = int_to_ptr.hbm [resolvable:$true] %s178
      %184 = dma.vmem_to_hbm [thread:$0]  %s177, 256, %s179, [#allocation12], 128, 128, 8
    $region45: #{tpu_custom_call.1} parent=1 // pred_fallthru
      _
    // Predicated region
    $region46: #{tpu_custom_call.1} parent=1 // pred_check
      _
    $region47: #{tpu_custom_call.1} parent=1 // pred_check_branch
      %186 = sbr.rel (0) target = $region49
    $region48: #{tpu_custom_call.1} parent=1 // pred_region
      %188 = dma.done [#allocation6], 256
    $region49: #{tpu_custom_call.1} parent=1 // pred_fallthru
      _
    // Predicated region
    $region50: #{tpu_custom_call.1} parent=1 // pred_check
      _
    $region51: #{tpu_custom_call.1} parent=1 // pred_check_branch
      %190 = sbr.rel (0) target = $region53
    $region52: #{tpu_custom_call.1} parent=1 // pred_region
      %192 = dma.done [#allocation12], 256
    $region53: #{tpu_custom_call.1} parent=1 // pred_fallthru
      _
    %193 = vsyncpa [#allocation5], 1
    %194 = vsyncpa [#allocation8], 1
    %195 = vsyncpa [#allocation6], 1
    %196 = vsyncpa [#allocation12], 1

</llo_original>
